<compile_context>
chip_gen: v7x
topology: tpu7x:2x2x1
jax: 0.10.0
libtpu: 0.0.40
codegen_flags: <defaults>
</compile_context>

<pallas_src>
import jax
import jax.numpy as jnp
from jax.experimental import pallas as pl
from jax.experimental.pallas import tpu as pltpu

FEAT = 1432                  # encoder output feature dim (fc in_features)
HEAD_DIMS = (2, 90, 7)       # fc1 (gender), fc2 (age), fc3 (emotions)
N_TOTAL = sum(HEAD_DIMS)     # 99
N_PAD = 128                  # fused output dim padded to one full lane tile
TM_MAX = 1024                # batch-tile cap (see VMEM arithmetic above)


def _round_up(a: int, b: int) -> int:
    return -(-a // b) * b


def _heads_kernel(x_ref, w_ref, b_ref, o_ref):
    # x_ref: [TM, FEAT] (f32 or bf16)   w_ref: [FEAT, N_PAD] bf16
    # b_ref: [1, N_PAD] f32             o_ref: [TM, N_PAD] f32
    x = x_ref[...].astype(jnp.bfloat16)   # no-op if encoder already emits bf16
    acc = jnp.dot(x, w_ref[...], preferred_element_type=jnp.float32)
    o_ref[...] = acc + b_ref[...]


@jax.jit
def multitask_heads(x, w_cat, b_cat):
    """x: [B, FEAT] float32/bfloat16. Returns [age, gender, emotions] (PyTorch order)."""
    B = x.shape[0]

    # Batch tile: multiple of 8 (sublane), at most ceil(B/2) so large-B calls
    # always give >= 2 "parallel" grid steps (both v7x TCs busy), capped at
    # TM_MAX. No batch padding: Pallas masks the ragged last tile.
    tm = min(TM_MAX, _round_up(pl.cdiv(B, 2), 8))
    grid_m = pl.cdiv(B, tm)

    flops = 2 * grid_m * tm * FEAT * N_PAD
    bytes_accessed = (x.size * x.dtype.itemsize) + (w_cat.size * 2) \
        + (b_cat.size * 4) + (B * N_PAD * 4)

    out = pl.pallas_call(
        _heads_kernel,
        out_shape=jax.ShapeDtypeStruct((B, N_PAD), jnp.float32),
        grid=(grid_m,),
        in_specs=[
            # x is consumed directly from HBM (full feature dim per block);
            # no wrapper-side cast/pad copy.
            pl.BlockSpec((tm, FEAT), lambda i: (i, 0)),
            # Constant block index -> weights/bias stay VMEM-resident.
            pl.BlockSpec((FEAT, N_PAD), lambda i: (0, 0)),
            pl.BlockSpec((1, N_PAD), lambda i: (0, 0)),
        ],
        out_specs=pl.BlockSpec((tm, N_PAD), lambda i: (i, 0)),
        compiler_params=pltpu.CompilerParams(
            dimension_semantics=("parallel",)),
        cost_estimate=pl.CostEstimate(
            flops=flops, transcendentals=0, bytes_accessed=bytes_accessed),
    )(x, w_cat, b_cat)

    gender = out[:, 0:2]
    age = out[:, 2:92]
    emotions = out[:, 92:99]
    return [age, gender, emotions]


def init_params(key):
    """Deterministic init mimicking nn.Linear default (U(-1/sqrt(in), 1/sqrt(in))).

    Returns (w_cat_bf16 [FEAT, N_PAD], b_cat_f32 [1, N_PAD]).
    """
    bound = 1.0 / jnp.sqrt(jnp.float32(FEAT))
    ws, bs = [], []
    for i, n_out in enumerate(HEAD_DIMS):
        kw, kb = jax.random.split(jax.random.fold_in(key, i))
        # PyTorch weight is [out, in]; store transposed [in, out] for x @ W.
        w = jax.random.uniform(kw, (FEAT, n_out), jnp.float32, -bound, bound)
        b = jax.random.uniform(kb, (n_out,), jnp.float32, -bound, bound)
        ws.append(w)
        bs.append(b)
    w_cat = jnp.concatenate(ws, axis=1)                      # [FEAT, 99] f32
    b_cat = jnp.concatenate(bs, axis=0)                      # [99] f32
    # Zero-pad only the fused output dim to N_PAD (lane-dense); K stays at
    # FEAT. Weights stored bf16 (f32 accumulation happens on the MXU).
    w_cat = jnp.pad(w_cat, ((0, 0), (0, N_PAD - N_TOTAL))).astype(jnp.bfloat16)
    b_cat = jnp.pad(b_cat, (0, N_PAD - N_TOTAL)).reshape(1, N_PAD)
    return w_cat, b_cat


if __name__ == "__main__":
    key = jax.random.PRNGKey(0)
    k_x, k_p = jax.random.split(key)

    B = 2
    # Pre-encoded features (encoder output), see TODO(synk) above.
    x = jax.random.normal(k_x, (B, FEAT), jnp.float32)
    w_cat, b_cat = init_params(k_p)

    age, gender, emotions = multitask_heads(x, w_cat, b_cat)
    jax.block_until_ready((age, gender, emotions))

    # Sanity check against plain-JAX reference using the same bf16 operands
    # (f32 accumulation), so only summation-order rounding differs.
    xb = x.astype(jnp.bfloat16).astype(jnp.float32)
    wf = w_cat.astype(jnp.float32)
    ref = xb @ wf[:, :N_TOTAL] + b_cat[0, :N_TOTAL]
    assert age.shape == (B, 90) and gender.shape == (B, 2) and emotions.shape == (B, 7)
    assert jnp.allclose(gender, ref[:, 0:2], atol=1e-3, rtol=1e-3)
    assert jnp.allclose(age, ref[:, 2:92], atol=1e-3, rtol=1e-3)
    assert jnp.allclose(emotions, ref[:, 92:99], atol=1e-3, rtol=1e-3)

    print("KERNEL_OK")
</pallas_src>

<mosaic_0001>
module attributes {stable_mosaic.version = 11 : i64} {
  func.func @_heads_kernel(%arg0: i32, %arg1: memref<8x1432xf32, #tpu.memory_space<vmem>>, %arg2: memref<1432x128xbf16, #tpu.memory_space<vmem>>, %arg3: memref<1x128xf32, #tpu.memory_space<vmem>>, %arg4: memref<8x128xf32, #tpu.memory_space<vmem>>) attributes {dimension_semantics = [#tpu.dimension_semantics<parallel>], iteration_bounds = array<i64: 1>, scalar_prefetch = 0 : i64, scratch_operands = 0 : i64, tpu.core_type = #tpu.core_type<tc>, window_params = [{transform_indices = @transform_0, window_bounds = array<i64: 8, 1432>}, {pipeline_mode = #tpu.pipeline_mode<synchronous>, transform_indices = @transform_1, window_bounds = array<i64: 1432, 128>}, {pipeline_mode = #tpu.pipeline_mode<synchronous>, transform_indices = @transform_2, window_bounds = array<i64: 1, 128>}, {transform_indices = @transform_3, window_bounds = array<i64: 8, 128>}]} {
    %c0 = arith.constant 0 : index
    %c0_0 = arith.constant 0 : index
    %0 = vector.load %arg1[%c0, %c0_0] : memref<8x1432xf32, #tpu.memory_space<vmem>>, vector<8x1432xf32>
    %1 = arith.truncf %0 : vector<8x1432xf32> to vector<8x1432xbf16>
    %c0_1 = arith.constant 0 : index
    %c0_2 = arith.constant 0 : index
    %2 = vector.load %arg2[%c0_1, %c0_2] : memref<1432x128xbf16, #tpu.memory_space<vmem>>, vector<1432x128xbf16>
    %cst = arith.constant dense<0.000000e+00> : vector<8x128xf32>
    %3 = tpu.matmul %1, %2, %cst {dimension_numbers = #tpu.dot_dimension_numbers<[1], [0], [0], [1], [0, 0, 1, 1], [], []>} : vector<8x1432xbf16>, vector<1432x128xbf16>, vector<8x128xf32> -> vector<8x128xf32>
    %c0_3 = arith.constant 0 : index
    %c0_4 = arith.constant 0 : index
    %4 = vector.load %arg3[%c0_3, %c0_4] : memref<1x128xf32, #tpu.memory_space<vmem>>, vector<1x128xf32>
    %5 = vector.broadcast %4 : vector<1x128xf32> to vector<8x128xf32>
    %6 = arith.addf %3, %5 : vector<8x128xf32>
    %c0_5 = arith.constant 0 : index
    %c0_6 = arith.constant 0 : index
    %7 = vector.load %arg4[%c0_5, %c0_6] : memref<8x128xf32, #tpu.memory_space<vmem>>, vector<8x128xf32>
    tpu.vector_store %arg4[%c0_5, %c0_6], %6 {strides = array<i32>} : memref<8x128xf32, #tpu.memory_space<vmem>>, vector<8x128xf32>,
    return
  }
  func.func @transform_0(%arg0: i32) -> (i32, i32) {
    %c0_i32 = arith.constant 0 : i32
    %c0_i32_0 = arith.constant 0 : i32
    return %arg0, %c0_i32 : i32, i32
  }
  func.func @transform_1(%arg0: i32) -> (i32, i32) {
    %c0_i32 = arith.constant 0 : i32
    %c0_i32_0 = arith.constant 0 : i32
    %c0_i32_1 = arith.constant 0 : i32
    return %c0_i32, %c0_i32_0 : i32, i32
  }
  func.func @transform_2(%arg0: i32) -> (i32, i32) {
    %c0_i32 = arith.constant 0 : i32
    %c0_i32_0 = arith.constant 0 : i32
    %c0_i32_1 = arith.constant 0 : i32
    return %c0_i32, %c0_i32_0 : i32, i32
  }
  func.func @transform_3(%arg0: i32) -> (i32, i32) {
    %c0_i32 = arith.constant 0 : i32
    %c0_i32_0 = arith.constant 0 : i32
    return %arg0, %c0_i32 : i32, i32
  }
}

</mosaic_0001>

<llo_original>
// kernel: multitask_heads.1
$region0: #{multitask_heads.1}
  #allocation0 [shape = 'u32[]', space=smem, size = 0x4, offset = 0x4, fixed_abs, tag = 'smem constant byte address 0x4 - core index']
  #allocation1 [shape = 'u32[144,128]{1,0:T(1,128)}', space=vmem, size = 0x12000, scoped, tag = 'internal scratch']
  %s0 = inlined_call_operand.hbm [shape: f32[2,1432], index: 0, kind: input, shape index: {}]
  %s1 = inlined_call_operand.hbm [shape: bf16[1432,128], index: 1, kind: input, shape index: {}]
  %s2 = inlined_call_operand.vmem [shape: f32[1,128], index: 2, kind: input, shape index: {}]
  %s3 = inlined_call_operand.vmem [shape: f32[2,128], index: 3, kind: output, shape index: {}]
  %s4 = sld [smem:[#allocation0]]
  $region60: #{multitask_heads.1} parent=0
    _
  %s6 = ssub.s32 1, %s4
  %s7 = scalar_select 0, %s6, %s4
  $region1: #{multitask_heads.1} parent=0
    #allocation2 [shape = 'u8[49152]{0}', space=vmem, size = 0xc000, scoped, tag = 'input window, operand 0, single buffered']
    #allocation3 [shape = 's32[1]{0}', space=sflag, size = 0x4, scoped, tag = 'scoped memory for multitask_heads.1']
    #allocation4 [shape = 'u8[366592]{0}', space=vmem, size = 0x59800, scoped, tag = 'input window, operand 1, single buffered']
    #allocation5 [shape = 's32[1]{0}', space=sflag, size = 0x4, scoped, tag = 'scoped memory for multitask_heads.1']
    #allocation6 [shape = 'u8[4096]{0}', space=vmem, size = 0x1000, scoped, tag = 'output window, operand 0, single buffered']
    %8 = vsyncpa [#allocation3], 0
    %9 = vsyncpa [#allocation5], 0
    // Predicated region
    $region2: #{multitask_heads.1} parent=1 // pred_check
      _
    $region3: #{multitask_heads.1} parent=1 // pred_check_branch
      %11 = sbr.rel (0) target = $region5
    $region4: #{multitask_heads.1} parent=1 // pred_region
      %s13 = ssub.s32 1536, 384
      %14 = vsyncadd [#allocation3], %s13
      %s15 = sshll.u32 [#allocation2], 4
      %s16 = int_to_ptr.vmem [resolvable:$true] %s15
      %21 = dma.hbm_to_vmem [thread:$0]  %s0, 384, %s16, [#allocation3], 384, 384, 24
    $region5: #{multitask_heads.1} parent=1 // pred_fallthru
      _
    // Predicated region
    $region6: #{multitask_heads.1} parent=1 // pred_check
      _
    $region7: #{multitask_heads.1} parent=1 // pred_check_branch
      %23 = sbr.rel (0) target = $region9
    $region8: #{multitask_heads.1} parent=1 // pred_region
      %s25 = ssub.s32 11456, 11456
      %26 = vsyncadd [#allocation5], %s25
      %s27 = sshll.u32 [#allocation4], 4
      %s28 = int_to_ptr.vmem [resolvable:$true] %s27
      %33 = dma.hbm_to_vmem [thread:$0]  %s1, 11456, %s28, [#allocation5], 64, 64, 4
    $region9: #{multitask_heads.1} parent=1 // pred_fallthru
      _
    // Predicated region
    $region10: #{multitask_heads.1} parent=1 // pred_check
      _
    $region11: #{multitask_heads.1} parent=1 // pred_check_branch
      %35 = sbr.rel (0) target = $region13
    $region12: #{multitask_heads.1} parent=1 // pred_region
      _
    $region13: #{multitask_heads.1} parent=1 // pred_fallthru
      _
    // Predicated region
    $region14: #{multitask_heads.1} parent=1 // pred_check
      _
    $region15: #{multitask_heads.1} parent=1 // pred_check_branch
      %37 = sbr.rel (0) target = $region17
    $region16: #{multitask_heads.1} parent=1 // pred_region
      %38 = dma.done [#allocation3], 1536
    $region17: #{multitask_heads.1} parent=1 // pred_fallthru
      _
    // Predicated region
    $region18: #{multitask_heads.1} parent=1 // pred_check
      _
    $region19: #{multitask_heads.1} parent=1 // pred_check_branch
      %40 = sbr.rel (0) target = $region21
    $region20: #{multitask_heads.1} parent=1 // pred_region
      %41 = dma.done [#allocation5], 11456
    $region21: #{multitask_heads.1} parent=1 // pred_fallthru
      _
    %v43 = vld [vmem:[#allocation2] sm:$0xff]
    %v44 = vld [vmem:[#allocation2 + $0x8] sm:$0xff]
    %v45 = vld [vmem:[#allocation2 + $0x10] sm:$0xff]
    %v46 = vld [vmem:[#allocation2 + $0x18] sm:$0xff]
    %v47 = vld [vmem:[#allocation2 + $0x20] sm:$0xff]
    %v48 = vld [vmem:[#allocation2 + $0x28] sm:$0xff]
    %v49 = vld [vmem:[#allocation2 + $0x30] sm:$0xff]
    %v50 = vld [vmem:[#allocation2 + $0x38] sm:$0xff]
    %v51 = vld [vmem:[#allocation2 + $0x40] sm:$0xff]
    %v52 = vld [vmem:[#allocation2 + $0x48] sm:$0xff]
    %v53 = vld [vmem:[#allocation2 + $0x50] sm:$0xff]
    %v54 = vld [vmem:[#allocation2 + $0x58] sm:$0xff]
    %v67 = vcombine.low %v43, %v46
    %v68 = vcombine.high %v43, %v46
    %v69 = vcombine.low %v49, %v52
    %v70 = vcombine.high %v49, %v52
    %v72 = vunpack.c.l.s4 1983009808
    %v73 = vunpack.c.0.s8 %v72
    %v74 = vlaneseq
    %v75 = vshrl.u32 %v74, 7
    %v76 = vsub.s32 %v73, %v75
    %v77 = vrot.slane %v67, %v76
    %v79 = vunpack.c.l.s4 1983009808
    %v80 = vunpack.c.0.s8 %v79
    %v81 = vlaneseq
    %v82 = vshrl.u32 %v81, 7
    %v83 = vsub.s32 %v80, %v82
    %v84 = vrot.slane %v68, %v83
    %v86 = vunpack.c.l.s4 1983009808
    %v87 = vunpack.c.0.s8 %v86
    %v88 = vlaneseq
    %v89 = vshrl.u32 %v88, 7
    %v90 = vsub.s32 %v87, %v89
    %v91 = vrot.slane %v69, %v90
    %v93 = vunpack.c.l.s4 1983009808
    %v94 = vunpack.c.0.s8 %v93
    %v95 = vlaneseq
    %v96 = vshrl.u32 %v95, 7
    %v97 = vsub.s32 %v94, %v96
    %v98 = vrot.slane %v70, %v97
    %v99 = vcombine.low %v77, %v91
    %v100 = vcombine.high %v77, %v91
    %v101 = vcombine.low %v84, %v98
    %v102 = vcombine.high %v84, %v98
    %v103 = vcombine.low %v44, %v47
    %v104 = vcombine.high %v44, %v47
    %v105 = vcombine.low %v50, %v53
    %v106 = vcombine.high %v50, %v53
    %v108 = vunpack.c.l.s4 1983009808
    %v109 = vunpack.c.0.s8 %v108
    %v110 = vlaneseq
    %v111 = vshrl.u32 %v110, 7
    %v112 = vsub.s32 %v109, %v111
    %v113 = vrot.slane %v103, %v112
    %v115 = vunpack.c.l.s4 1983009808
    %v116 = vunpack.c.0.s8 %v115
    %v117 = vlaneseq
    %v118 = vshrl.u32 %v117, 7
    %v119 = vsub.s32 %v116, %v118
    %v120 = vrot.slane %v104, %v119
    %v122 = vunpack.c.l.s4 1983009808
    %v123 = vunpack.c.0.s8 %v122
    %v124 = vlaneseq
    %v125 = vshrl.u32 %v124, 7
    %v126 = vsub.s32 %v123, %v125
    %v127 = vrot.slane %v105, %v126
    %v129 = vunpack.c.l.s4 1983009808
    %v130 = vunpack.c.0.s8 %v129
    %v131 = vlaneseq
    %v132 = vshrl.u32 %v131, 7
    %v133 = vsub.s32 %v130, %v132
    %v134 = vrot.slane %v106, %v133
    %v135 = vcombine.low %v113, %v127
    %v136 = vcombine.high %v113, %v127
    %v137 = vcombine.low %v120, %v134
    %v138 = vcombine.high %v120, %v134
    %v139 = vcombine.low %v45, %v48
    %v140 = vcombine.high %v45, %v48
    %v141 = vcombine.low %v51, %v54
    %v142 = vcombine.high %v51, %v54
    %v144 = vunpack.c.l.s4 1983009808
    %v145 = vunpack.c.0.s8 %v144
    %v146 = vlaneseq
    %v147 = vshrl.u32 %v146, 7
    %v148 = vsub.s32 %v145, %v147
    %v149 = vrot.slane %v139, %v148
    %v151 = vunpack.c.l.s4 1983009808
    %v152 = vunpack.c.0.s8 %v151
    %v153 = vlaneseq
    %v154 = vshrl.u32 %v153, 7
    %v155 = vsub.s32 %v152, %v154
    %v156 = vrot.slane %v140, %v155
    %v158 = vunpack.c.l.s4 1983009808
    %v159 = vunpack.c.0.s8 %v158
    %v160 = vlaneseq
    %v161 = vshrl.u32 %v160, 7
    %v162 = vsub.s32 %v159, %v161
    %v163 = vrot.slane %v141, %v162
    %v165 = vunpack.c.l.s4 1983009808
    %v166 = vunpack.c.0.s8 %v165
    %v167 = vlaneseq
    %v168 = vshrl.u32 %v167, 7
    %v169 = vsub.s32 %v166, %v168
    %v170 = vrot.slane %v142, %v169
    %v171 = vcombine.low %v149, %v163
    %v172 = vcombine.high %v149, %v163
    %v173 = vcombine.low %v156, %v170
    %v174 = vcombine.high %v156, %v170
    %v187 = vpack.c.bf16 %v99, %v99
    %v188 = vpack.c.bf16 %v100, %v100
    %v189 = vpack.c.bf16 %v101, %v101
    %v190 = vpack.c.bf16 %v102, %v102
    %v191 = vpack.c.bf16 %v135, %v135
    %v192 = vpack.c.bf16 %v136, %v136
    %v193 = vpack.c.bf16 %v137, %v137
    %v194 = vpack.c.bf16 %v138, %v138
    %v195 = vpack.c.bf16 %v171, %v171
    %v196 = vpack.c.bf16 %v172, %v172
    %v197 = vpack.c.bf16 %v173, %v173
    %v198 = vpack.c.bf16 %v174, %v174
    %v199 = vld [vmem:[#allocation4] sm:$0xf]
    %v200 = vld [vmem:[#allocation4 + $0x4] sm:$0xf]
    %v201 = vld [vmem:[#allocation4 + $0x8] sm:$0xf]
    %v202 = vld [vmem:[#allocation4 + $0xc] sm:$0xf]
    %v203 = vld [vmem:[#allocation4 + $0x10] sm:$0xf]
    %v204 = vld [vmem:[#allocation4 + $0x14] sm:$0xf]
    %v205 = vld [vmem:[#allocation4 + $0x18] sm:$0xf]
    %v206 = vld [vmem:[#allocation4 + $0x1c] sm:$0xf]
    %v207 = vld [vmem:[#allocation4 + $0x20] sm:$0xf]
    %v208 = vld [vmem:[#allocation4 + $0x24] sm:$0xf]
    %v209 = vld [vmem:[#allocation4 + $0x28] sm:$0xf]
    %v210 = vld [vmem:[#allocation4 + $0x2c] sm:$0xf]
    %v211 = vld [vmem:[#allocation4 + $0x30] sm:$0xf]
    %v212 = vld [vmem:[#allocation4 + $0x34] sm:$0xf]
    %v213 = vld [vmem:[#allocation4 + $0x38] sm:$0xf]
    %v214 = vld [vmem:[#allocation4 + $0x3c] sm:$0xf]
    %v215 = vld [vmem:[#allocation4 + $0x40] sm:$0xf]
    %v216 = vld [vmem:[#allocation4 + $0x44] sm:$0xf]
    %v217 = vld [vmem:[#allocation4 + $0x48] sm:$0xf]
    %v218 = vld [vmem:[#allocation4 + $0x4c] sm:$0xf]
    %v219 = vld [vmem:[#allocation4 + $0x50] sm:$0xf]
    %v220 = vld [vmem:[#allocation4 + $0x54] sm:$0xf]
    %v221 = vld [vmem:[#allocation4 + $0x58] sm:$0xf]
    %v222 = vld [vmem:[#allocation4 + $0x5c] sm:$0xf]
    %v223 = vld [vmem:[#allocation4 + $0x60] sm:$0xf]
    %v224 = vld [vmem:[#allocation4 + $0x64] sm:$0xf]
    %v225 = vld [vmem:[#allocation4 + $0x68] sm:$0xf]
    %v226 = vld [vmem:[#allocation4 + $0x6c] sm:$0xf]
    %v227 = vld [vmem:[#allocation4 + $0x70] sm:$0xf]
    %v228 = vld [vmem:[#allocation4 + $0x74] sm:$0xf]
    %v229 = vld [vmem:[#allocation4 + $0x78] sm:$0xf]
    %v230 = vld [vmem:[#allocation4 + $0x7c] sm:$0xf]
    %v231 = vld [vmem:[#allocation4 + $0x80] sm:$0xf]
    %v232 = vld [vmem:[#allocation4 + $0x84] sm:$0xf]
    %v233 = vld [vmem:[#allocation4 + $0x88] sm:$0xf]
    %v234 = vld [vmem:[#allocation4 + $0x8c] sm:$0xf]
    %v235 = vld [vmem:[#allocation4 + $0x90] sm:$0xf]
    %v236 = vld [vmem:[#allocation4 + $0x94] sm:$0xf]
    %v237 = vld [vmem:[#allocation4 + $0x98] sm:$0xf]
    %v238 = vld [vmem:[#allocation4 + $0x9c] sm:$0xf]
    %v239 = vld [vmem:[#allocation4 + $0xa0] sm:$0xf]
    %v240 = vld [vmem:[#allocation4 + $0xa4] sm:$0xf]
    %v241 = vld [vmem:[#allocation4 + $0xa8] sm:$0xf]
    %v242 = vld [vmem:[#allocation4 + $0xac] sm:$0xf]
    %v243 = vld [vmem:[#allocation4 + $0xb0] sm:$0xf]
    %v244 = vld [vmem:[#allocation4 + $0xb4] sm:$0xf]
    %v245 = vld [vmem:[#allocation4 + $0xb8] sm:$0xf]
    %v246 = vld [vmem:[#allocation4 + $0xbc] sm:$0xf]
    %v247 = vld [vmem:[#allocation4 + $0xc0] sm:$0xf]
    %v248 = vld [vmem:[#allocation4 + $0xc4] sm:$0xf]
    %v249 = vld [vmem:[#allocation4 + $0xc8] sm:$0xf]
    %v250 = vld [vmem:[#allocation4 + $0xcc] sm:$0xf]
    %v251 = vld [vmem:[#allocation4 + $0xd0] sm:$0xf]
    %v252 = vld [vmem:[#allocation4 + $0xd4] sm:$0xf]
    %v253 = vld [vmem:[#allocation4 + $0xd8] sm:$0xf]
    %v254 = vld [vmem:[#allocation4 + $0xdc] sm:$0xf]
    %v255 = vld [vmem:[#allocation4 + $0xe0] sm:$0xf]
    %v256 = vld [vmem:[#allocation4 + $0xe4] sm:$0xf]
    %v257 = vld [vmem:[#allocation4 + $0xe8] sm:$0xf]
    %v258 = vld [vmem:[#allocation4 + $0xec] sm:$0xf]
    %v259 = vld [vmem:[#allocation4 + $0xf0] sm:$0xf]
    %v260 = vld [vmem:[#allocation4 + $0xf4] sm:$0xf]
    %v261 = vld [vmem:[#allocation4 + $0xf8] sm:$0xf]
    %v262 = vld [vmem:[#allocation4 + $0xfc] sm:$0xf]
    %v263 = vld [vmem:[#allocation4 + $0x100] sm:$0xf]
    %v264 = vld [vmem:[#allocation4 + $0x104] sm:$0xf]
    %v265 = vld [vmem:[#allocation4 + $0x108] sm:$0xf]
    %v266 = vld [vmem:[#allocation4 + $0x10c] sm:$0xf]
    %v267 = vld [vmem:[#allocation4 + $0x110] sm:$0xf]
    %v268 = vld [vmem:[#allocation4 + $0x114] sm:$0xf]
    %v269 = vld [vmem:[#allocation4 + $0x118] sm:$0xf]
    %v270 = vld [vmem:[#allocation4 + $0x11c] sm:$0xf]
    %v271 = vld [vmem:[#allocation4 + $0x120] sm:$0xf]
    %v272 = vld [vmem:[#allocation4 + $0x124] sm:$0xf]
    %v273 = vld [vmem:[#allocation4 + $0x128] sm:$0xf]
    %v274 = vld [vmem:[#allocation4 + $0x12c] sm:$0xf]
    %v275 = vld [vmem:[#allocation4 + $0x130] sm:$0xf]
    %v276 = vld [vmem:[#allocation4 + $0x134] sm:$0xf]
    %v277 = vld [vmem:[#allocation4 + $0x138] sm:$0xf]
    %v278 = vld [vmem:[#allocation4 + $0x13c] sm:$0xf]
    %v279 = vld [vmem:[#allocation4 + $0x140] sm:$0xf]
    %v280 = vld [vmem:[#allocation4 + $0x144] sm:$0xf]
    %v281 = vld [vmem:[#allocation4 + $0x148] sm:$0xf]
    %v282 = vld [vmem:[#allocation4 + $0x14c] sm:$0xf]
    %v283 = vld [vmem:[#allocation4 + $0x150] sm:$0xf]
    %v284 = vld [vmem:[#allocation4 + $0x154] sm:$0xf]
    %v285 = vld [vmem:[#allocation4 + $0x158] sm:$0xf]
    %v286 = vld [vmem:[#allocation4 + $0x15c] sm:$0xf]
    %v287 = vld [vmem:[#allocation4 + $0x160] sm:$0xf]
    %v288 = vld [vmem:[#allocation4 + $0x164] sm:$0xf]
    %v289 = vld [vmem:[#allocation4 + $0x168] sm:$0xf]
    %v290 = vld [vmem:[#allocation4 + $0x16c] sm:$0xf]
    %v291 = vld [vmem:[#allocation4 + $0x170] sm:$0xf]
    %v292 = vld [vmem:[#allocation4 + $0x174] sm:$0xf]
    %v293 = vld [vmem:[#allocation4 + $0x178] sm:$0xf]
    %v294 = vld [vmem:[#allocation4 + $0x17c] sm:$0xf]
    %v295 = vld [vmem:[#allocation4 + $0x180] sm:$0xf]
    %v296 = vld [vmem:[#allocation4 + $0x184] sm:$0xf]
    %v297 = vld [vmem:[#allocation4 + $0x188] sm:$0xf]
    %v298 = vld [vmem:[#allocation4 + $0x18c] sm:$0xf]
    %v299 = vld [vmem:[#allocation4 + $0x190] sm:$0xf]
    %v300 = vld [vmem:[#allocation4 + $0x194] sm:$0xf]
    %v301 = vld [vmem:[#allocation4 + $0x198] sm:$0xf]
    %v302 = vld [vmem:[#allocation4 + $0x19c] sm:$0xf]
    %v303 = vld [vmem:[#allocation4 + $0x1a0] sm:$0xf]
    %v304 = vld [vmem:[#allocation4 + $0x1a4] sm:$0xf]
    %v305 = vld [vmem:[#allocation4 + $0x1a8] sm:$0xf]
    %v306 = vld [vmem:[#allocation4 + $0x1ac] sm:$0xf]
    %v307 = vld [vmem:[#allocation4 + $0x1b0] sm:$0xf]
    %v308 = vld [vmem:[#allocation4 + $0x1b4] sm:$0xf]
    %v309 = vld [vmem:[#allocation4 + $0x1b8] sm:$0xf]
    %v310 = vld [vmem:[#allocation4 + $0x1bc] sm:$0xf]
    %v311 = vld [vmem:[#allocation4 + $0x1c0] sm:$0xf]
    %v312 = vld [vmem:[#allocation4 + $0x1c4] sm:$0xf]
    %v313 = vld [vmem:[#allocation4 + $0x1c8] sm:$0xf]
    %v314 = vld [vmem:[#allocation4 + $0x1cc] sm:$0xf]
    %v315 = vld [vmem:[#allocation4 + $0x1d0] sm:$0xf]
    %v316 = vld [vmem:[#allocation4 + $0x1d4] sm:$0xf]
    %v317 = vld [vmem:[#allocation4 + $0x1d8] sm:$0xf]
    %v318 = vld [vmem:[#allocation4 + $0x1dc] sm:$0xf]
    %v319 = vld [vmem:[#allocation4 + $0x1e0] sm:$0xf]
    %v320 = vld [vmem:[#allocation4 + $0x1e4] sm:$0xf]
    %v321 = vld [vmem:[#allocation4 + $0x1e8] sm:$0xf]
    %v322 = vld [vmem:[#allocation4 + $0x1ec] sm:$0xf]
    %v323 = vld [vmem:[#allocation4 + $0x1f0] sm:$0xf]
    %v324 = vld [vmem:[#allocation4 + $0x1f4] sm:$0xf]
    %v325 = vld [vmem:[#allocation4 + $0x1f8] sm:$0xf]
    %v326 = vld [vmem:[#allocation4 + $0x1fc] sm:$0xf]
    %v327 = vld [vmem:[#allocation4 + $0x200] sm:$0xf]
    %v328 = vld [vmem:[#allocation4 + $0x204] sm:$0xf]
    %v329 = vld [vmem:[#allocation4 + $0x208] sm:$0xf]
    %v330 = vld [vmem:[#allocation4 + $0x20c] sm:$0xf]
    %v331 = vld [vmem:[#allocation4 + $0x210] sm:$0xf]
    %v332 = vld [vmem:[#allocation4 + $0x214] sm:$0xf]
    %v333 = vld [vmem:[#allocation4 + $0x218] sm:$0xf]
    %v334 = vld [vmem:[#allocation4 + $0x21c] sm:$0xf]
    %v335 = vld [vmem:[#allocation4 + $0x220] sm:$0xf]
    %v336 = vld [vmem:[#allocation4 + $0x224] sm:$0xf]
    %v337 = vld [vmem:[#allocation4 + $0x228] sm:$0xf]
    %v338 = vld [vmem:[#allocation4 + $0x22c] sm:$0xf]
    %v339 = vld [vmem:[#allocation4 + $0x230] sm:$0xf]
    %v340 = vld [vmem:[#allocation4 + $0x234] sm:$0xf]
    %v341 = vld [vmem:[#allocation4 + $0x238] sm:$0xf]
    %v342 = vld [vmem:[#allocation4 + $0x23c] sm:$0xf]
    %v343 = vld [vmem:[#allocation4 + $0x240] sm:$0xf]
    %v344 = vld [vmem:[#allocation4 + $0x244] sm:$0xf]
    %v345 = vld [vmem:[#allocation4 + $0x248] sm:$0xf]
    %v346 = vld [vmem:[#allocation4 + $0x24c] sm:$0xf]
    %v347 = vld [vmem:[#allocation4 + $0x250] sm:$0xf]
    %v348 = vld [vmem:[#allocation4 + $0x254] sm:$0xf]
    %v349 = vld [vmem:[#allocation4 + $0x258] sm:$0xf]
    %v350 = vld [vmem:[#allocation4 + $0x25c] sm:$0xf]
    %v351 = vld [vmem:[#allocation4 + $0x260] sm:$0xf]
    %v352 = vld [vmem:[#allocation4 + $0x264] sm:$0xf]
    %v353 = vld [vmem:[#allocation4 + $0x268] sm:$0xf]
    %v354 = vld [vmem:[#allocation4 + $0x26c] sm:$0xf]
    %v355 = vld [vmem:[#allocation4 + $0x270] sm:$0xf]
    %v356 = vld [vmem:[#allocation4 + $0x274] sm:$0xf]
    %v357 = vld [vmem:[#allocation4 + $0x278] sm:$0xf]
    %v358 = vld [vmem:[#allocation4 + $0x27c] sm:$0xf]
    %v359 = vld [vmem:[#allocation4 + $0x280] sm:$0xf]
    %v360 = vld [vmem:[#allocation4 + $0x284] sm:$0xf]
    %v361 = vld [vmem:[#allocation4 + $0x288] sm:$0xf]
    %v362 = vld [vmem:[#allocation4 + $0x28c] sm:$0xf]
    %v363 = vld [vmem:[#allocation4 + $0x290] sm:$0xf]
    %v364 = vld [vmem:[#allocation4 + $0x294] sm:$0xf]
    %v365 = vld [vmem:[#allocation4 + $0x298] sm:$0xf]
    %v366 = vld [vmem:[#allocation4 + $0x29c] sm:$0xf]
    %v367 = vld [vmem:[#allocation4 + $0x2a0] sm:$0xf]
    %v368 = vld [vmem:[#allocation4 + $0x2a4] sm:$0xf]
    %v369 = vld [vmem:[#allocation4 + $0x2a8] sm:$0xf]
    %v370 = vld [vmem:[#allocation4 + $0x2ac] sm:$0xf]
    %v371 = vld [vmem:[#allocation4 + $0x2b0] sm:$0xf]
    %v372 = vld [vmem:[#allocation4 + $0x2b4] sm:$0xf]
    %v373 = vld [vmem:[#allocation4 + $0x2b8] sm:$0xf]
    %v374 = vld [vmem:[#allocation4 + $0x2bc] sm:$0xf]
    %v375 = vld [vmem:[#allocation4 + $0x2c0] sm:$0xf]
    %v376 = vld [vmem:[#allocation4 + $0x2c4] sm:$0xf]
    %v377 = vld [vmem:[#allocation4 + $0x2c8] sm:$0xf]
    %v378 = vld [vmem:[%s2] sm:$0x1]
    %v380 = vlaneseq
    %v381 = vshrl.u32 %v380, 7
    %v382 = vsub.s32 0, %v381
    %v383 = vrot.slane %v378, %v382
    %v564 = vunpack.c.l.b16 %v199
    %v565 = vunpack.c.l.b16 %v200
    %v566 = vunpack.c.l.b16 %v201
    %v567 = vunpack.c.l.b16 %v202
    %v568 = vunpack.c.l.b16 %v203
    %v569 = vunpack.c.l.b16 %v204
    %v570 = vunpack.c.l.b16 %v205
    %v571 = vunpack.c.l.b16 %v206
    %v572 = vunpack.c.l.b16 %v207
    %v573 = vunpack.c.l.b16 %v208
    %v574 = vunpack.c.l.b16 %v209
    %v575 = vunpack.c.l.b16 %v210
    %v576 = vunpack.c.l.b16 %v211
    %v577 = vunpack.c.l.b16 %v212
    %v578 = vunpack.c.l.b16 %v213
    %v579 = vunpack.c.l.b16 %v214
    %v580 = vunpack.c.l.b16 %v215
    %v581 = vunpack.c.l.b16 %v216
    %v582 = vunpack.c.l.b16 %v217
    %v583 = vunpack.c.l.b16 %v218
    %v584 = vunpack.c.l.b16 %v219
    %v585 = vunpack.c.l.b16 %v220
    %v586 = vunpack.c.l.b16 %v221
    %v587 = vunpack.c.l.b16 %v222
    %v588 = vunpack.c.l.b16 %v223
    %v589 = vunpack.c.l.b16 %v224
    %v590 = vunpack.c.l.b16 %v225
    %v591 = vunpack.c.l.b16 %v226
    %v592 = vunpack.c.l.b16 %v227
    %v593 = vunpack.c.l.b16 %v228
    %v594 = vunpack.c.l.b16 %v229
    %v595 = vunpack.c.l.b16 %v230
    %v596 = vunpack.c.l.b16 %v231
    %v597 = vunpack.c.l.b16 %v232
    %v598 = vunpack.c.l.b16 %v233
    %v599 = vunpack.c.l.b16 %v234
    %v600 = vunpack.c.l.b16 %v235
    %v601 = vunpack.c.l.b16 %v236
    %v602 = vunpack.c.l.b16 %v237
    %v603 = vunpack.c.l.b16 %v238
    %v604 = vunpack.c.l.b16 %v239
    %v605 = vunpack.c.l.b16 %v240
    %v606 = vunpack.c.l.b16 %v241
    %v607 = vunpack.c.l.b16 %v242
    %v608 = vunpack.c.l.b16 %v243
    %v609 = vunpack.c.l.b16 %v244
    %v610 = vunpack.c.l.b16 %v245
    %v611 = vunpack.c.l.b16 %v246
    %v612 = vunpack.c.l.b16 %v247
    %v613 = vunpack.c.l.b16 %v248
    %v614 = vunpack.c.l.b16 %v249
    %v615 = vunpack.c.l.b16 %v250
    %v616 = vunpack.c.l.b16 %v251
    %v617 = vunpack.c.l.b16 %v252
    %v618 = vunpack.c.l.b16 %v253
    %v619 = vunpack.c.l.b16 %v254
    %v620 = vunpack.c.l.b16 %v255
    %v621 = vunpack.c.l.b16 %v256
    %v622 = vunpack.c.l.b16 %v257
    %v623 = vunpack.c.l.b16 %v258
    %v624 = vunpack.c.l.b16 %v259
    %v625 = vunpack.c.l.b16 %v260
    %v626 = vunpack.c.l.b16 %v261
    %v627 = vunpack.c.l.b16 %v262
    %v628 = vunpack.c.l.b16 %v263
    %v629 = vunpack.c.l.b16 %v264
    %v630 = vunpack.c.l.b16 %v265
    %v631 = vunpack.c.l.b16 %v266
    %v632 = vunpack.c.l.b16 %v267
    %v633 = vunpack.c.l.b16 %v268
    %v634 = vunpack.c.l.b16 %v269
    %v635 = vunpack.c.l.b16 %v270
    %v636 = vunpack.c.l.b16 %v271
    %v637 = vunpack.c.l.b16 %v272
    %v638 = vunpack.c.l.b16 %v273
    %v639 = vunpack.c.l.b16 %v274
    %v640 = vunpack.c.l.b16 %v275
    %v641 = vunpack.c.l.b16 %v276
    %v642 = vunpack.c.l.b16 %v277
    %v643 = vunpack.c.l.b16 %v278
    %v644 = vunpack.c.l.b16 %v279
    %v645 = vunpack.c.l.b16 %v280
    %v646 = vunpack.c.l.b16 %v281
    %v647 = vunpack.c.l.b16 %v282
    %v648 = vunpack.c.l.b16 %v283
    %v649 = vunpack.c.l.b16 %v284
    %v650 = vunpack.c.l.b16 %v285
    %v651 = vunpack.c.l.b16 %v286
    %v652 = vunpack.c.l.b16 %v287
    %v653 = vunpack.c.l.b16 %v288
    %v654 = vunpack.c.l.b16 %v289
    %v655 = vunpack.c.l.b16 %v290
    %v656 = vunpack.c.l.b16 %v291
    %v657 = vunpack.c.l.b16 %v292
    %v658 = vunpack.c.l.b16 %v293
    %v659 = vunpack.c.l.b16 %v294
    %v660 = vunpack.c.l.b16 %v295
    %v661 = vunpack.c.l.b16 %v296
    %v662 = vunpack.c.l.b16 %v297
    %v663 = vunpack.c.l.b16 %v298
    %v664 = vunpack.c.l.b16 %v299
    %v665 = vunpack.c.l.b16 %v300
    %v666 = vunpack.c.l.b16 %v301
    %v667 = vunpack.c.l.b16 %v302
    %v668 = vunpack.c.l.b16 %v303
    %v669 = vunpack.c.l.b16 %v304
    %v670 = vunpack.c.l.b16 %v305
    %v671 = vunpack.c.l.b16 %v306
    %v672 = vunpack.c.l.b16 %v307
    %v673 = vunpack.c.l.b16 %v308
    %v674 = vunpack.c.l.b16 %v309
    %v675 = vunpack.c.l.b16 %v310
    %v676 = vunpack.c.l.b16 %v311
    %v677 = vunpack.c.l.b16 %v312
    %v678 = vunpack.c.l.b16 %v313
    %v679 = vunpack.c.l.b16 %v314
    %v680 = vunpack.c.l.b16 %v315
    %v681 = vunpack.c.l.b16 %v316
    %v682 = vunpack.c.l.b16 %v317
    %v683 = vunpack.c.l.b16 %v318
    %v684 = vunpack.c.l.b16 %v319
    %v685 = vunpack.c.l.b16 %v320
    %v686 = vunpack.c.l.b16 %v321
    %v687 = vunpack.c.l.b16 %v322
    %v688 = vunpack.c.l.b16 %v323
    %v689 = vunpack.c.l.b16 %v324
    %v690 = vunpack.c.l.b16 %v325
    %v691 = vunpack.c.l.b16 %v326
    %v692 = vunpack.c.l.b16 %v327
    %v693 = vunpack.c.l.b16 %v328
    %v694 = vunpack.c.l.b16 %v329
    %v695 = vunpack.c.l.b16 %v330
    %v696 = vunpack.c.l.b16 %v331
    %v697 = vunpack.c.l.b16 %v332
    %v698 = vunpack.c.l.b16 %v333
    %v699 = vunpack.c.l.b16 %v334
    %v700 = vunpack.c.l.b16 %v335
    %v701 = vunpack.c.l.b16 %v336
    %v702 = vunpack.c.l.b16 %v337
    %v703 = vunpack.c.l.b16 %v338
    %v704 = vunpack.c.l.b16 %v339
    %v705 = vunpack.c.l.b16 %v340
    %v706 = vunpack.c.l.b16 %v341
    %v707 = vunpack.c.l.b16 %v342
    %v708 = vunpack.c.l.b16 %v343
    %v709 = vunpack.c.l.b16 %v344
    %v710 = vunpack.c.l.b16 %v345
    %v711 = vunpack.c.l.b16 %v346
    %v712 = vunpack.c.l.b16 %v347
    %v713 = vunpack.c.l.b16 %v348
    %v714 = vunpack.c.l.b16 %v349
    %v715 = vunpack.c.l.b16 %v350
    %v716 = vunpack.c.l.b16 %v351
    %v717 = vunpack.c.l.b16 %v352
    %v718 = vunpack.c.l.b16 %v353
    %v719 = vunpack.c.l.b16 %v354
    %v720 = vunpack.c.l.b16 %v355
    %v721 = vunpack.c.l.b16 %v356
    %v722 = vunpack.c.l.b16 %v357
    %v723 = vunpack.c.l.b16 %v358
    %v724 = vunpack.c.l.b16 %v359
    %v725 = vunpack.c.l.b16 %v360
    %v726 = vunpack.c.l.b16 %v361
    %v727 = vunpack.c.l.b16 %v362
    %v728 = vunpack.c.l.b16 %v363
    %v729 = vunpack.c.l.b16 %v364
    %v730 = vunpack.c.l.b16 %v365
    %v731 = vunpack.c.l.b16 %v366
    %v732 = vunpack.c.l.b16 %v367
    %v733 = vunpack.c.l.b16 %v368
    %v734 = vunpack.c.l.b16 %v369
    %v735 = vunpack.c.l.b16 %v370
    %v736 = vunpack.c.l.b16 %v371
    %v737 = vunpack.c.l.b16 %v372
    %v738 = vunpack.c.l.b16 %v373
    %v739 = vunpack.c.l.b16 %v374
    %v740 = vunpack.c.l.b16 %v375
    %v741 = vunpack.c.l.b16 %v376
    %v742 = vunpack.c.l.b16 %v377
    %v743 = vpack.c.b16 %v565, %v564
    %v744 = vpack.c.b16 %v567, %v566
    %v745 = vpack.c.b16 %v569, %v568
    %v746 = vpack.c.b16 %v571, %v570
    %v747 = vpack.c.b16 %v573, %v572
    %v748 = vpack.c.b16 %v575, %v574
    %v749 = vpack.c.b16 %v577, %v576
    %v750 = vpack.c.b16 %v579, %v578
    %v751 = vpack.c.b16 %v581, %v580
    %v752 = vpack.c.b16 %v583, %v582
    %v753 = vpack.c.b16 %v585, %v584
    %v754 = vpack.c.b16 %v587, %v586
    %v755 = vpack.c.b16 %v589, %v588
    %v756 = vpack.c.b16 %v591, %v590
    %v757 = vpack.c.b16 %v593, %v592
    %v758 = vpack.c.b16 %v595, %v594
    %v759 = vpack.c.b16 %v597, %v596
    %v760 = vpack.c.b16 %v599, %v598
    %v761 = vpack.c.b16 %v601, %v600
    %v762 = vpack.c.b16 %v603, %v602
    %v763 = vpack.c.b16 %v605, %v604
    %v764 = vpack.c.b16 %v607, %v606
    %v765 = vpack.c.b16 %v609, %v608
    %v766 = vpack.c.b16 %v611, %v610
    %v767 = vpack.c.b16 %v613, %v612
    %v768 = vpack.c.b16 %v615, %v614
    %v769 = vpack.c.b16 %v617, %v616
    %v770 = vpack.c.b16 %v619, %v618
    %v771 = vpack.c.b16 %v621, %v620
    %v772 = vpack.c.b16 %v623, %v622
    %v773 = vpack.c.b16 %v625, %v624
    %v774 = vpack.c.b16 %v627, %v626
    %v775 = vpack.c.b16 %v629, %v628
    %v776 = vpack.c.b16 %v631, %v630
    %v777 = vpack.c.b16 %v633, %v632
    %v778 = vpack.c.b16 %v635, %v634
    %v779 = vpack.c.b16 %v637, %v636
    %v780 = vpack.c.b16 %v639, %v638
    %v781 = vpack.c.b16 %v641, %v640
    %v782 = vpack.c.b16 %v643, %v642
    %v783 = vpack.c.b16 %v645, %v644
    %v784 = vpack.c.b16 %v647, %v646
    %v785 = vpack.c.b16 %v649, %v648
    %v786 = vpack.c.b16 %v651, %v650
    %v787 = vpack.c.b16 %v653, %v652
    %v788 = vpack.c.b16 %v655, %v654
    %v789 = vpack.c.b16 %v657, %v656
    %v790 = vpack.c.b16 %v659, %v658
    %v791 = vpack.c.b16 %v661, %v660
    %v792 = vpack.c.b16 %v663, %v662
    %v793 = vpack.c.b16 %v665, %v664
    %v794 = vpack.c.b16 %v667, %v666
    %v795 = vpack.c.b16 %v669, %v668
    %v796 = vpack.c.b16 %v671, %v670
    %v797 = vpack.c.b16 %v673, %v672
    %v798 = vpack.c.b16 %v675, %v674
    %v799 = vpack.c.b16 %v677, %v676
    %v800 = vpack.c.b16 %v679, %v678
    %v801 = vpack.c.b16 %v681, %v680
    %v802 = vpack.c.b16 %v683, %v682
    %v803 = vpack.c.b16 %v685, %v684
    %v804 = vpack.c.b16 %v687, %v686
    %v805 = vpack.c.b16 %v689, %v688
    %v806 = vpack.c.b16 %v691, %v690
    %v807 = vpack.c.b16 %v693, %v692
    %v808 = vpack.c.b16 %v695, %v694
    %v809 = vpack.c.b16 %v697, %v696
    %v810 = vpack.c.b16 %v699, %v698
    %v811 = vpack.c.b16 %v701, %v700
    %v812 = vpack.c.b16 %v703, %v702
    %v813 = vpack.c.b16 %v705, %v704
    %v814 = vpack.c.b16 %v707, %v706
    %v815 = vpack.c.b16 %v709, %v708
    %v816 = vpack.c.b16 %v711, %v710
    %v817 = vpack.c.b16 %v713, %v712
    %v818 = vpack.c.b16 %v715, %v714
    %v819 = vpack.c.b16 %v717, %v716
    %v820 = vpack.c.b16 %v719, %v718
    %v821 = vpack.c.b16 %v721, %v720
    %v822 = vpack.c.b16 %v723, %v722
    %v823 = vpack.c.b16 %v725, %v724
    %v824 = vpack.c.b16 %v727, %v726
    %v825 = vpack.c.b16 %v729, %v728
    %v826 = vpack.c.b16 %v731, %v730
    %v827 = vpack.c.b16 %v733, %v732
    %v828 = vpack.c.b16 %v735, %v734
    %v829 = vpack.c.b16 %v737, %v736
    %v830 = vpack.c.b16 %v739, %v738
    %v831 = vpack.c.b16 %v741, %v740
    %v832 = vpack.c.b16 %v742, %v742
    %vm922 = vcmask 195584
    %v924 = vsel %vm922, %v198, 0
    %vm926 = vcmask 1043456
    %v928 = vsel %vm926, %v832, 0
    %930 = vmatprep.subr.bf16.mxu0 0
    %931 = vmatpush1.bf16.msra.mxu0 %v743
    %932 = vmatprep.subr.bf16.mxu0 0
    %933 = vmatpush1.bf16.msra.mxu0 %v744
    %934 = vmatprep.subr.bf16.mxu0 0
    %935 = vmatpush1.bf16.msra.mxu0 %v745
    %936 = vmatprep.subr.bf16.mxu0 0
    %937 = vmatpush1.bf16.msra.mxu0 %v746
    %938 = vmatprep.subr.bf16.mxu0 0
    %939 = vmatpush1.bf16.msra.mxu0 %v747
    %940 = vmatprep.subr.bf16.mxu0 0
    %941 = vmatpush1.bf16.msra.mxu0 %v748
    %942 = vmatprep.subr.bf16.mxu0 0
    %943 = vmatpush1.bf16.msra.mxu0 %v749
    %944 = vmatprep.subr.bf16.mxu0 0
    %945 = vmatpush1.bf16.msra.mxu0 %v750
    %946 = vmatprep.subr.bf16.mxu0 0
    %947 = vmatpush1.bf16.msra.mxu0 %v751
    %948 = vmatprep.subr.bf16.mxu0 0
    %949 = vmatpush1.bf16.msra.mxu0 %v752
    %950 = vmatprep.subr.bf16.mxu0 0
    %951 = vmatpush1.bf16.msra.mxu0 %v753
    %952 = vmatprep.subr.bf16.mxu0 0
    %953 = vmatpush1.bf16.msra.mxu0 %v754
    %954 = vmatprep.subr.bf16.mxu0 0
    %955 = vmatpush1.bf16.msra.mxu0 %v755
    %956 = vmatprep.subr.bf16.mxu0 0
    %957 = vmatpush1.bf16.msra.mxu0 %v756
    %958 = vmatprep.subr.bf16.mxu0 0
    %959 = vmatpush1.bf16.msra.mxu0 %v757
    %960 = vmatprep.subr.bf16.mxu0 0
    %961 = vmatpush1.bf16.msra.mxu0 %v758
    %962 = vmatprep.mubr.bf16.mxu0 %v188
    %963 = vmatmul.mubr.bf16.gmra.mrb[0].mxu0 %v187
    %v964 = vpop.f32.mrb[0].mxu0
    %v965 = vadd.f32 %v383, %v964
    %v966 = vpop.f32.mrb[0].mxu0
    %v967 = vpop.f32.mrb[0].mxu0
    %v968 = vpop.f32.mrb[0].mxu0
    %969 = vdwg.mxu0
    %970 = vmatprep.subr.bf16.mxu0 0
    %971 = vmatpush1.bf16.msra.mxu0 %v759
    %972 = vmatprep.subr.bf16.mxu0 0
    %973 = vmatpush1.bf16.msra.mxu0 %v760
    %974 = vmatprep.subr.bf16.mxu0 0
    %975 = vmatpush1.bf16.msra.mxu0 %v761
    %976 = vmatprep.subr.bf16.mxu0 0
    %977 = vmatpush1.bf16.msra.mxu0 %v762
    %978 = vmatprep.subr.bf16.mxu0 0
    %979 = vmatpush1.bf16.msra.mxu0 %v763
    %980 = vmatprep.subr.bf16.mxu0 0
    %981 = vmatpush1.bf16.msra.mxu0 %v764
    %982 = vmatprep.subr.bf16.mxu0 0
    %983 = vmatpush1.bf16.msra.mxu0 %v765
    %984 = vmatprep.subr.bf16.mxu0 0
    %985 = vmatpush1.bf16.msra.mxu0 %v766
    %986 = vmatprep.subr.bf16.mxu0 0
    %987 = vmatpush1.bf16.msra.mxu0 %v767
    %988 = vmatprep.subr.bf16.mxu0 0
    %989 = vmatpush1.bf16.msra.mxu0 %v768
    %990 = vmatprep.subr.bf16.mxu0 0
    %991 = vmatpush1.bf16.msra.mxu0 %v769
    %992 = vmatprep.subr.bf16.mxu0 0
    %993 = vmatpush1.bf16.msra.mxu0 %v770
    %994 = vmatprep.subr.bf16.mxu0 0
    %995 = vmatpush1.bf16.msra.mxu0 %v771
    %996 = vmatprep.subr.bf16.mxu0 0
    %997 = vmatpush1.bf16.msra.mxu0 %v772
    %998 = vmatprep.subr.bf16.mxu0 0
    %999 = vmatpush1.bf16.msra.mxu0 %v773
    %1000 = vmatprep.subr.bf16.mxu0 0
    %1001 = vmatpush1.bf16.msra.mxu0 %v774
    %1002 = vmatprep.mubr.bf16.mxu0 %v190
    %1003 = vmatmul.mubr.bf16.gmra.mrb[0].mxu0 %v189
    %v1004 = vpop.f32.mrb[0].mxu0
    %v1005 = vadd.f32 %v965, %v1004
    %v1006 = vpop.f32.mrb[0].mxu0
    %v1007 = vpop.f32.mrb[0].mxu0
    %v1008 = vpop.f32.mrb[0].mxu0
    %1009 = vdwg.mxu0
    %1010 = vmatprep.subr.bf16.mxu0 0
    %1011 = vmatpush1.bf16.msra.mxu0 %v775
    %1012 = vmatprep.subr.bf16.mxu0 0
    %1013 = vmatpush1.bf16.msra.mxu0 %v776
    %1014 = vmatprep.subr.bf16.mxu0 0
    %1015 = vmatpush1.bf16.msra.mxu0 %v777
    %1016 = vmatprep.subr.bf16.mxu0 0
    %1017 = vmatpush1.bf16.msra.mxu0 %v778
    %1018 = vmatprep.subr.bf16.mxu0 0
    %1019 = vmatpush1.bf16.msra.mxu0 %v779
    %1020 = vmatprep.subr.bf16.mxu0 0
    %1021 = vmatpush1.bf16.msra.mxu0 %v780
    %1022 = vmatprep.subr.bf16.mxu0 0
    %1023 = vmatpush1.bf16.msra.mxu0 %v781
    %1024 = vmatprep.subr.bf16.mxu0 0
    %1025 = vmatpush1.bf16.msra.mxu0 %v782
    %1026 = vmatprep.subr.bf16.mxu0 0
    %1027 = vmatpush1.bf16.msra.mxu0 %v783
    %1028 = vmatprep.subr.bf16.mxu0 0
    %1029 = vmatpush1.bf16.msra.mxu0 %v784
    %1030 = vmatprep.subr.bf16.mxu0 0
    %1031 = vmatpush1.bf16.msra.mxu0 %v785
    %1032 = vmatprep.subr.bf16.mxu0 0
    %1033 = vmatpush1.bf16.msra.mxu0 %v786
    %1034 = vmatprep.subr.bf16.mxu0 0
    %1035 = vmatpush1.bf16.msra.mxu0 %v787
    %1036 = vmatprep.subr.bf16.mxu0 0
    %1037 = vmatpush1.bf16.msra.mxu0 %v788
    %1038 = vmatprep.subr.bf16.mxu0 0
    %1039 = vmatpush1.bf16.msra.mxu0 %v789
    %1040 = vmatprep.subr.bf16.mxu0 0
    %1041 = vmatpush1.bf16.msra.mxu0 %v790
    %1042 = vmatprep.mubr.bf16.mxu0 %v192
    %1043 = vmatmul.mubr.bf16.gmra.mrb[0].mxu0 %v191
    %v1044 = vpop.f32.mrb[0].mxu0
    %v1045 = vadd.f32 %v1005, %v1044
    %v1046 = vpop.f32.mrb[0].mxu0
    %v1047 = vpop.f32.mrb[0].mxu0
    %v1048 = vpop.f32.mrb[0].mxu0
    %1049 = vdwg.mxu0
    %1050 = vmatprep.subr.bf16.mxu0 0
    %1051 = vmatpush1.bf16.msra.mxu0 %v791
    %1052 = vmatprep.subr.bf16.mxu0 0
    %1053 = vmatpush1.bf16.msra.mxu0 %v792
    %1054 = vmatprep.subr.bf16.mxu0 0
    %1055 = vmatpush1.bf16.msra.mxu0 %v793
    %1056 = vmatprep.subr.bf16.mxu0 0
    %1057 = vmatpush1.bf16.msra.mxu0 %v794
    %1058 = vmatprep.subr.bf16.mxu0 0
    %1059 = vmatpush1.bf16.msra.mxu0 %v795
    %1060 = vmatprep.subr.bf16.mxu0 0
    %1061 = vmatpush1.bf16.msra.mxu0 %v796
    %1062 = vmatprep.subr.bf16.mxu0 0
    %1063 = vmatpush1.bf16.msra.mxu0 %v797
    %1064 = vmatprep.subr.bf16.mxu0 0
    %1065 = vmatpush1.bf16.msra.mxu0 %v798
    %1066 = vmatprep.subr.bf16.mxu0 0
    %1067 = vmatpush1.bf16.msra.mxu0 %v799
    %1068 = vmatprep.subr.bf16.mxu0 0
    %1069 = vmatpush1.bf16.msra.mxu0 %v800
    %1070 = vmatprep.subr.bf16.mxu0 0
    %1071 = vmatpush1.bf16.msra.mxu0 %v801
    %1072 = vmatprep.subr.bf16.mxu0 0
    %1073 = vmatpush1.bf16.msra.mxu0 %v802
    %1074 = vmatprep.subr.bf16.mxu0 0
    %1075 = vmatpush1.bf16.msra.mxu0 %v803
    %1076 = vmatprep.subr.bf16.mxu0 0
    %1077 = vmatpush1.bf16.msra.mxu0 %v804
    %1078 = vmatprep.subr.bf16.mxu0 0
    %1079 = vmatpush1.bf16.msra.mxu0 %v805
    %1080 = vmatprep.subr.bf16.mxu0 0
    %1081 = vmatpush1.bf16.msra.mxu0 %v806
    %1082 = vmatprep.mubr.bf16.mxu0 %v194
    %1083 = vmatmul.mubr.bf16.gmra.mrb[0].mxu0 %v193
    %v1084 = vpop.f32.mrb[0].mxu0
    %v1085 = vadd.f32 %v1045, %v1084
    %v1086 = vpop.f32.mrb[0].mxu0
    %v1087 = vpop.f32.mrb[0].mxu0
    %v1088 = vpop.f32.mrb[0].mxu0
    %1089 = vdwg.mxu0
    %1090 = vmatprep.subr.bf16.mxu0 0
    %1091 = vmatpush1.bf16.msra.mxu0 %v807
    %1092 = vmatprep.subr.bf16.mxu0 0
    %1093 = vmatpush1.bf16.msra.mxu0 %v808
    %1094 = vmatprep.subr.bf16.mxu0 0
    %1095 = vmatpush1.bf16.msra.mxu0 %v809
    %1096 = vmatprep.subr.bf16.mxu0 0
    %1097 = vmatpush1.bf16.msra.mxu0 %v810
    %1098 = vmatprep.subr.bf16.mxu0 0
    %1099 = vmatpush1.bf16.msra.mxu0 %v811
    %1100 = vmatprep.subr.bf16.mxu0 0
    %1101 = vmatpush1.bf16.msra.mxu0 %v812
    %1102 = vmatprep.subr.bf16.mxu0 0
    %1103 = vmatpush1.bf16.msra.mxu0 %v813
    %1104 = vmatprep.subr.bf16.mxu0 0
    %1105 = vmatpush1.bf16.msra.mxu0 %v814
    %1106 = vmatprep.subr.bf16.mxu0 0
    %1107 = vmatpush1.bf16.msra.mxu0 %v815
    %1108 = vmatprep.subr.bf16.mxu0 0
    %1109 = vmatpush1.bf16.msra.mxu0 %v816
    %1110 = vmatprep.subr.bf16.mxu0 0
    %1111 = vmatpush1.bf16.msra.mxu0 %v817
    %1112 = vmatprep.subr.bf16.mxu0 0
    %1113 = vmatpush1.bf16.msra.mxu0 %v818
    %1114 = vmatprep.subr.bf16.mxu0 0
    %1115 = vmatpush1.bf16.msra.mxu0 %v819
    %1116 = vmatprep.subr.bf16.mxu0 0
    %1117 = vmatpush1.bf16.msra.mxu0 %v820
    %1118 = vmatprep.subr.bf16.mxu0 0
    %1119 = vmatpush1.bf16.msra.mxu0 %v821
    %1120 = vmatprep.subr.bf16.mxu0 0
    %1121 = vmatpush1.bf16.msra.mxu0 %v822
    %1122 = vmatprep.mubr.bf16.mxu0 %v196
    %1123 = vmatmul.mubr.bf16.gmra.mrb[0].mxu0 %v195
    %v1124 = vpop.f32.mrb[0].mxu0
    %v1125 = vadd.f32 %v1085, %v1124
    %v1126 = vpop.f32.mrb[0].mxu0
    %v1127 = vpop.f32.mrb[0].mxu0
    %v1128 = vpop.f32.mrb[0].mxu0
    %1129 = vdwg.mxu0
    %1130 = vmatprep.subr.bf16.mxu0 0
    %1131 = vmatpush1.bf16.msra.mxu0 %v823
    %1132 = vmatprep.subr.bf16.mxu0 0
    %1133 = vmatpush1.bf16.msra.mxu0 %v824
    %1134 = vmatprep.subr.bf16.mxu0 0
    %1135 = vmatpush1.bf16.msra.mxu0 %v825
    %1136 = vmatprep.subr.bf16.mxu0 0
    %1137 = vmatpush1.bf16.msra.mxu0 %v826
    %1138 = vmatprep.subr.bf16.mxu0 0
    %1139 = vmatpush1.bf16.msra.mxu0 %v827
    %1140 = vmatprep.subr.bf16.mxu0 0
    %1141 = vmatpush1.bf16.msra.mxu0 %v828
    %1142 = vmatprep.subr.bf16.mxu0 0
    %1143 = vmatpush1.bf16.msra.mxu0 %v829
    %1144 = vmatprep.subr.bf16.mxu0 0
    %1145 = vmatpush1.bf16.msra.mxu0 %v830
    %1146 = vmatprep.subr.bf16.mxu0 0
    %1147 = vmatpush1.bf16.msra.mxu0 %v831
    %1148 = vmatprep.subr.bf16.mxu0 0
    %1149 = vmatpush1.bf16.msra.mxu0 %v928
    %1150 = vmatprep.subr.bf16.mxu0 0
    %1151 = vmatpush1.bf16.msra.mxu0 0
    %1152 = vmatprep.subr.bf16.mxu0 0
    %1153 = vmatpush1.bf16.msra.mxu0 0
    %1154 = vmatprep.subr.bf16.mxu0 0
    %1155 = vmatpush1.bf16.msra.mxu0 0
    %1156 = vmatprep.subr.bf16.mxu0 0
    %1157 = vmatpush1.bf16.msra.mxu0 0
    %1158 = vmatprep.subr.bf16.mxu0 0
    %1159 = vmatpush1.bf16.msra.mxu0 0
    %1160 = vmatprep.subr.bf16.mxu0 0
    %1161 = vmatpush1.bf16.msra.mxu0 0
    %1162 = vmatprep.mubr.bf16.mxu0 %v924
    %1163 = vmatmul.mubr.bf16.gmra.mrb[0].mxu0 %v197
    %v1164 = vpop.f32.mrb[0].mxu0
    %v1165 = vadd.f32 %v1125, %v1164
    %v1166 = vpop.f32.mrb[0].mxu0
    %v1167 = vpop.f32.mrb[0].mxu0
    %v1168 = vpop.f32.mrb[0].mxu0
    %1169 = vdwg.mxu0
    %1170 = vst [vmem:[#allocation6] sm:$0xff] %v1165
    // Predicated region
    $region22: #{multitask_heads.1} parent=1 // pred_check
      _
    $region23: #{multitask_heads.1} parent=1 // pred_check_branch
      %1172 = sbr.rel (0) target = $region25
    $region24: #{multitask_heads.1} parent=1 // pred_region
      // Predicated region
      $region26: #{multitask_heads.1} parent=24 // pred_check
        _
      $region27: #{multitask_heads.1} parent=24 // pred_check_branch
        %1174 = sbr.rel (0) target = $region29
      $region28: #{multitask_heads.1} parent=24 // pred_region
        // Predicated region
        $region30: #{multitask_heads.1} parent=28 // pred_check
          _
        $region31: #{multitask_heads.1} parent=28 // pred_check_branch
          %1176 = sbr.rel target = $region33
        $region32: #{multitask_heads.1} parent=28 // pred_region
          // Predicated region
          $region45: #{multitask_heads.1} parent=32 // pred_check
            _
          $region46: #{multitask_heads.1} parent=32 // pred_check_branch
            %1191 = sbr.rel (0) target = $region48
          $region47: #{multitask_heads.1} parent=32 // pred_region
            loop: start=0, step=1, limit=1
            $region49: #{multitask_heads.1} parent=47 // loop_pre_header
              _
            $region50: #{multitask_heads.1} parent=47 // loop_header
              %s1194 = sphi 0, %s1198
              %p1195 = scmp.ge.s32.totalorder %s1194, 1
              %s1199 = sphi [#allocation6], [#allocation6]
              %s1200 = sphi %s3, %s3
            $region51: #{multitask_heads.1} parent=47 // loop_header_branch
              %1197 = sbr.rel (%p1195) target = $region55
            $region52: #{multitask_heads.1} parent=47 // loop_body
              %v1201 = vld [vmem:[%s1199] sm:$0x3]
              %1202 = vst [vmem:[%s1200] sm:$0x3] %v1201
            $region53: #{multitask_heads.1} parent=47 // loop_footer
              %s1198 = sadd.s32 1, %s1194
            $region54: #{multitask_heads.1} parent=47 // loop_footer_branch
              %1193 = sbr.rel target = $region50
            $region55: #{multitask_heads.1} parent=47 // loop_exit
              _
          $region48: #{multitask_heads.1} parent=32 // pred_fallthru
            _
        $region33: #{multitask_heads.1} parent=28 // pred_fallthru
          _
        // Predicated region
        $region34: #{multitask_heads.1} parent=28 // pred_check
          _
        $region35: #{multitask_heads.1} parent=28 // pred_check_branch
          %1178 = sbr.rel (0) target = $region37
        $region36: #{multitask_heads.1} parent=28 // pred_region
          loop: start=0, step=1, limit=1
          $region38: #{multitask_heads.1} parent=36 // loop_pre_header
            _
          $region39: #{multitask_heads.1} parent=36 // loop_header
            %s1181 = sphi 0, %s1185
            %p1182 = scmp.ge.s32.totalorder %s1181, 1
            %s1186 = sphi [#allocation6], [#allocation6]
            %s1187 = sphi %s3, %s3
          $region40: #{multitask_heads.1} parent=36 // loop_header_branch
            %1184 = sbr.rel (%p1182) target = $region44
          $region41: #{multitask_heads.1} parent=36 // loop_body
            %v1188 = vld [vmem:[%s1186] sm:$0x3]
            %1189 = vst [vmem:[%s1187] sm:$0x3] %v1188
          $region42: #{multitask_heads.1} parent=36 // loop_footer
            %s1185 = sadd.s32 1, %s1181
          $region43: #{multitask_heads.1} parent=36 // loop_footer_branch
            %1180 = sbr.rel target = $region39
          $region44: #{multitask_heads.1} parent=36 // loop_exit
            _
        $region37: #{multitask_heads.1} parent=28 // pred_fallthru
          _
      $region29: #{multitask_heads.1} parent=24 // pred_fallthru
        _
      %1203 = vnop
    $region25: #{multitask_heads.1} parent=1 // pred_fallthru
      _
    // Predicated region
    $region56: #{multitask_heads.1} parent=1 // pred_check
      _
    $region57: #{multitask_heads.1} parent=1 // pred_check_branch
      %1205 = sbr.rel (0) target = $region59
    $region58: #{multitask_heads.1} parent=1 // pred_region
      _
    $region59: #{multitask_heads.1} parent=1 // pred_fallthru
      _
    %1206 = vsyncpa [#allocation3], 1
    %1207 = vsyncpa [#allocation5], 1

</llo_original>
